<compile_context>
chip_gen: v7x
topology: tpu7x:2x2x1
jax: 0.10.0
libtpu: 0.0.40
codegen_flags: <defaults>
</compile_context>

<pallas_src>
import jax
import jax.numpy as jnp
from jax import lax
from jax.experimental import pallas as pl
from jax.experimental.pallas import tpu as pltpu


# ---------------------------------------------------------------------------
# Pallas kernel:  out = SiLU(h_pre[time]) @ W2 + b2     (h_pre = table@W1+b1)
# ---------------------------------------------------------------------------
def _time_mlp_kernel(time_ref, hpre_ref, w2b2_ref, o_ref, h_scratch):
    B, D = o_ref.shape

    # Row gather via SMEM-indexed dynamic reads: no one-hot MXU matmul, no
    # padded int32 index tile in VMEM.  B is small and static -> fully unrolled.
    for b in range(B):
        t_b = time_ref[b]                                        # SMEM scalar
        h_scratch[pl.ds(b, 1), :] = hpre_ref[pl.ds(t_b, 1), :]   # (1, D) row

    h = h_scratch[...]                                           # (B, D) f32
    h = h * jax.nn.sigmoid(h)                                    # SiLU (VPU + EUP)

    # Packed [W2; b2] -> slice back out (static slices, zero runtime cost).
    w2 = w2b2_ref[pl.ds(0, D), :]                                # (D, D)
    b2 = w2b2_ref[pl.ds(D, 1), :]                                # (1, D)
    y = jnp.dot(h, w2, preferred_element_type=jnp.float32,
                precision=lax.Precision.HIGHEST) + b2
    o_ref[...] = y.astype(o_ref.dtype)
    # NOTE: D=32 < 128 lanes -> masked stores; a lane-dense output layout only
    # pays off once D is scaled to realistic diffusion sizes (256-1280).


def time_mlp_fused(time, h_pre, w2b2):
    """Fused gather -> SiLU -> Linear as a single Pallas call."""
    B = time.shape[0]
    T, D = h_pre.shape
    time_i32 = time.astype(jnp.int32)

    grid_spec = pltpu.PrefetchScalarGridSpec(
        num_scalar_prefetch=1,            # `time` lives in SMEM
        grid=(1,),
        in_specs=[
            pl.BlockSpec((T, D), lambda i, t: (0, 0)),       # h_pre (full table)
            pl.BlockSpec((D + 1, D), lambda i, t: (0, 0)),   # packed [W2; b2]
        ],
        out_specs=pl.BlockSpec((B, D), lambda i, t: (0, 0)),
        scratch_shapes=[pltpu.VMEM((B, D), jnp.float32)],    # gathered rows
    )

    cost = pl.CostEstimate(
        flops=2 * B * D * D,                                  # second matmul
        transcendentals=B * D,                                # sigmoid
        bytes_accessed=4 * (T * D + (D + 1) * D + B * D) + 4 * B,
    )

    return pl.pallas_call(
        _time_mlp_kernel,
        out_shape=jax.ShapeDtypeStruct((B, D), jnp.float32),
        grid_spec=grid_spec,
        compiler_params=pltpu.CompilerParams(
            dimension_semantics=("arbitrary",)),
        cost_estimate=cost,
    )(time_i32, h_pre, w2b2)


# ---------------------------------------------------------------------------
# Module-equivalent setup / wrapper
# ---------------------------------------------------------------------------
def make_time_embedding_table(total_time: int, time_embedding_dim: int):
    """Reproduce the PyTorch __init__ sinusoidal table exactly (rows = t=1..T)."""
    assert time_embedding_dim % 2 == 0, "time embedding must be divisible by 2."
    half = time_embedding_dim // 2
    factor = 2.0 * jnp.arange(half, dtype=jnp.float32) / time_embedding_dim
    factor = (10000.0 ** factor)[None, :]                              # (1, D/2)
    times = jnp.arange(1, total_time + 1, dtype=jnp.float32)[:, None] / factor
    return jnp.concatenate([jnp.sin(times), jnp.cos(times)], axis=1)   # (T, D)


def init_params(key, time_embedding_dim: int):
    """PyTorch-Linear-style init, weights stored transposed (y = x @ W + b)."""
    D = time_embedding_dim
    k1, k2, k3, k4 = jax.random.split(key, 4)
    bound = 1.0 / jnp.sqrt(D)
    w1 = jax.random.uniform(k1, (D, D), jnp.float32, -bound, bound)
    b1 = jax.random.uniform(k2, (1, D), jnp.float32, -bound, bound)
    w2 = jax.random.uniform(k3, (D, D), jnp.float32, -bound, bound)
    b2 = jax.random.uniform(k4, (1, D), jnp.float32, -bound, bound)
    return w1, b1, w2, b2


def precompute_hidden(table, w1, b1):
    """h_pre = table @ W1 + b1: one tiny (T,D)x(D,D) matmul, done ONCE per
    parameter set (setup-time, outside the per-call hot path)."""
    return jnp.dot(table, w1, precision=lax.Precision.HIGHEST) + b1    # (T, D)


def pack_w2_b2(w2, b2):
    """Stack b2 as the last row of W2 -> single (D+1, D) input buffer."""
    return jnp.concatenate([w2, b2], axis=0)


def time_embedding_block_forward(time, h_pre, w2b2):
    """forward(time): fused gather + SiLU + Linear on TPU via Pallas."""
    # TODO(synk): the PyTorch runtime assert `(time >= 0) & (time <= T)` has no
    # clean in-kernel equivalent under jit; indices are assumed valid here.
    return time_mlp_fused(time, h_pre, w2b2)


# ---------------------------------------------------------------------------
# Pure-JAX reference (mirrors the PyTorch module directly, no precompute)
# ---------------------------------------------------------------------------
def reference_forward(time, table, w1, b1, w2, b2):
    x = table[time]
    h = jnp.dot(x, w1, precision=lax.Precision.HIGHEST) + b1
    h = h * jax.nn.sigmoid(h)
    return jnp.dot(h, w2, precision=lax.Precision.HIGHEST) + b2


if __name__ == "__main__":
    TOTAL_TIME = 16          # T
    TIME_EMB_DIM = 32        # D (even)
    BATCH = 8                # number of time indices queried

    key = jax.random.PRNGKey(0)
    k_param, k_time = jax.random.split(key)

    table = make_time_embedding_table(TOTAL_TIME, TIME_EMB_DIM)
    w1, b1, w2, b2 = init_params(k_param, TIME_EMB_DIM)
    h_pre = precompute_hidden(table, w1, b1)     # setup-time, not in hot path
    w2b2 = pack_w2_b2(w2, b2)                    # one packed param buffer

    # integer time steps in [0, T-1] (valid rows of the precomputed table;
    # same direct-indexing convention as the PyTorch `self.time_embs[time]`)
    time = jax.random.randint(k_time, (BATCH,), 0, TOTAL_TIME, dtype=jnp.int32)

    out = time_embedding_block_forward(time, h_pre, w2b2)
    out = jax.block_until_ready(out)

    ref = reference_forward(time, table, w1, b1, w2, b2)
    assert out.shape == (BATCH, TIME_EMB_DIM)
    assert jnp.allclose(out, ref, atol=1e-4, rtol=1e-4), "mismatch vs reference"

    print("KERNEL_OK")
</pallas_src>

<mosaic_0001>
module attributes {stable_mosaic.version = 11 : i64} {
  func.func @_time_mlp_kernel(%arg0: i32, %arg1: memref<8xi32, #tpu.memory_space<smem>>, %arg2: memref<16x32xf32, #tpu.memory_space<vmem>>, %arg3: memref<33x32xf32, #tpu.memory_space<vmem>>, %arg4: memref<8x32xf32, #tpu.memory_space<vmem>>, %arg5: memref<8x32xf32, #tpu.memory_space<vmem>>) attributes {dimension_semantics = [#tpu.dimension_semantics<arbitrary>], iteration_bounds = array<i64: 1>, scalar_prefetch = 1 : i64, scratch_operands = 1 : i64, tpu.core_type = #tpu.core_type<tc>, window_params = [{pipeline_mode = #tpu.pipeline_mode<synchronous>, transform_indices = @transform_0, window_bounds = array<i64: 16, 32>}, {pipeline_mode = #tpu.pipeline_mode<synchronous>, transform_indices = @transform_1, window_bounds = array<i64: 33, 32>}, {pipeline_mode = #tpu.pipeline_mode<synchronous>, transform_indices = @transform_2, window_bounds = array<i64: 8, 32>}]} {
    %c0 = arith.constant 0 : index
    %0 = memref.load %arg1[%c0] : memref<8xi32, #tpu.memory_space<smem>>
    %1 = arith.index_cast %0 : i32 to index
    %c0_0 = arith.constant 0 : index
    %2 = vector.load %arg2[%1, %c0_0] : memref<16x32xf32, #tpu.memory_space<vmem>>, vector<1x32xf32>
    %c0_1 = arith.constant 0 : index
    %c0_2 = arith.constant 0 : index
    %3 = vector.load %arg5[%c0_1, %c0_2] : memref<8x32xf32, #tpu.memory_space<vmem>>, vector<1x32xf32>
    tpu.vector_store %arg5[%c0_1, %c0_2], %2 {strides = array<i32>} : memref<8x32xf32, #tpu.memory_space<vmem>>, vector<1x32xf32>,
    %c1 = arith.constant 1 : index
    %4 = memref.load %arg1[%c1] : memref<8xi32, #tpu.memory_space<smem>>
    %5 = arith.index_cast %4 : i32 to index
    %c0_3 = arith.constant 0 : index
    %6 = vector.load %arg2[%5, %c0_3] : memref<16x32xf32, #tpu.memory_space<vmem>>, vector<1x32xf32>
    %c1_4 = arith.constant 1 : index
    %c0_5 = arith.constant 0 : index
    %7 = vector.load %arg5[%c1_4, %c0_5] : memref<8x32xf32, #tpu.memory_space<vmem>>, vector<1x32xf32>
    tpu.vector_store %arg5[%c1_4, %c0_5], %6 {strides = array<i32>} : memref<8x32xf32, #tpu.memory_space<vmem>>, vector<1x32xf32>,
    %c2 = arith.constant 2 : index
    %8 = memref.load %arg1[%c2] : memref<8xi32, #tpu.memory_space<smem>>
    %9 = arith.index_cast %8 : i32 to index
    %c0_6 = arith.constant 0 : index
    %10 = vector.load %arg2[%9, %c0_6] : memref<16x32xf32, #tpu.memory_space<vmem>>, vector<1x32xf32>
    %c2_7 = arith.constant 2 : index
    %c0_8 = arith.constant 0 : index
    %11 = vector.load %arg5[%c2_7, %c0_8] : memref<8x32xf32, #tpu.memory_space<vmem>>, vector<1x32xf32>
    tpu.vector_store %arg5[%c2_7, %c0_8], %10 {strides = array<i32>} : memref<8x32xf32, #tpu.memory_space<vmem>>, vector<1x32xf32>,
    %c3 = arith.constant 3 : index
    %12 = memref.load %arg1[%c3] : memref<8xi32, #tpu.memory_space<smem>>
    %13 = arith.index_cast %12 : i32 to index
    %c0_9 = arith.constant 0 : index
    %14 = vector.load %arg2[%13, %c0_9] : memref<16x32xf32, #tpu.memory_space<vmem>>, vector<1x32xf32>
    %c3_10 = arith.constant 3 : index
    %c0_11 = arith.constant 0 : index
    %15 = vector.load %arg5[%c3_10, %c0_11] : memref<8x32xf32, #tpu.memory_space<vmem>>, vector<1x32xf32>
    tpu.vector_store %arg5[%c3_10, %c0_11], %14 {strides = array<i32>} : memref<8x32xf32, #tpu.memory_space<vmem>>, vector<1x32xf32>,
    %c4 = arith.constant 4 : index
    %16 = memref.load %arg1[%c4] : memref<8xi32, #tpu.memory_space<smem>>
    %17 = arith.index_cast %16 : i32 to index
    %c0_12 = arith.constant 0 : index
    %18 = vector.load %arg2[%17, %c0_12] : memref<16x32xf32, #tpu.memory_space<vmem>>, vector<1x32xf32>
    %c4_13 = arith.constant 4 : index
    %c0_14 = arith.constant 0 : index
    %19 = vector.load %arg5[%c4_13, %c0_14] : memref<8x32xf32, #tpu.memory_space<vmem>>, vector<1x32xf32>
    tpu.vector_store %arg5[%c4_13, %c0_14], %18 {strides = array<i32>} : memref<8x32xf32, #tpu.memory_space<vmem>>, vector<1x32xf32>,
    %c5 = arith.constant 5 : index
    %20 = memref.load %arg1[%c5] : memref<8xi32, #tpu.memory_space<smem>>
    %21 = arith.index_cast %20 : i32 to index
    %c0_15 = arith.constant 0 : index
    %22 = vector.load %arg2[%21, %c0_15] : memref<16x32xf32, #tpu.memory_space<vmem>>, vector<1x32xf32>
    %c5_16 = arith.constant 5 : index
    %c0_17 = arith.constant 0 : index
    %23 = vector.load %arg5[%c5_16, %c0_17] : memref<8x32xf32, #tpu.memory_space<vmem>>, vector<1x32xf32>
    tpu.vector_store %arg5[%c5_16, %c0_17], %22 {strides = array<i32>} : memref<8x32xf32, #tpu.memory_space<vmem>>, vector<1x32xf32>,
    %c6 = arith.constant 6 : index
    %24 = memref.load %arg1[%c6] : memref<8xi32, #tpu.memory_space<smem>>
    %25 = arith.index_cast %24 : i32 to index
    %c0_18 = arith.constant 0 : index
    %26 = vector.load %arg2[%25, %c0_18] : memref<16x32xf32, #tpu.memory_space<vmem>>, vector<1x32xf32>
    %c6_19 = arith.constant 6 : index
    %c0_20 = arith.constant 0 : index
    %27 = vector.load %arg5[%c6_19, %c0_20] : memref<8x32xf32, #tpu.memory_space<vmem>>, vector<1x32xf32>
    tpu.vector_store %arg5[%c6_19, %c0_20], %26 {strides = array<i32>} : memref<8x32xf32, #tpu.memory_space<vmem>>, vector<1x32xf32>,
    %c7 = arith.constant 7 : index
    %28 = memref.load %arg1[%c7] : memref<8xi32, #tpu.memory_space<smem>>
    %29 = arith.index_cast %28 : i32 to index
    %c0_21 = arith.constant 0 : index
    %30 = vector.load %arg2[%29, %c0_21] : memref<16x32xf32, #tpu.memory_space<vmem>>, vector<1x32xf32>
    %c7_22 = arith.constant 7 : index
    %c0_23 = arith.constant 0 : index
    %31 = vector.load %arg5[%c7_22, %c0_23] : memref<8x32xf32, #tpu.memory_space<vmem>>, vector<1x32xf32>
    tpu.vector_store %arg5[%c7_22, %c0_23], %30 {strides = array<i32>} : memref<8x32xf32, #tpu.memory_space<vmem>>, vector<1x32xf32>,
    %c0_24 = arith.constant 0 : index
    %c0_25 = arith.constant 0 : index
    %32 = vector.load %arg5[%c0_24, %c0_25] : memref<8x32xf32, #tpu.memory_space<vmem>>, vector<8x32xf32>
    %33 = arith.negf %32 : vector<8x32xf32>
    %34 = math.exp %33 : vector<8x32xf32>
    %cst = arith.constant 1.000000e+00 : f32
    %35 = vector.broadcast %cst : f32 to vector<8x32xf32>
    %36 = arith.addf %35, %34 : vector<8x32xf32>
    %37 = arith.divf %35, %36 : vector<8x32xf32>
    %38 = arith.mulf %32, %37 : vector<8x32xf32>
    %c0_26 = arith.constant 0 : index
    %c0_27 = arith.constant 0 : index
    %39 = vector.load %arg3[%c0_26, %c0_27] : memref<33x32xf32, #tpu.memory_space<vmem>>, vector<32x32xf32>
    %c32 = arith.constant 32 : index
    %c0_28 = arith.constant 0 : index
    %40 = vector.load %arg3[%c32, %c0_28] : memref<33x32xf32, #tpu.memory_space<vmem>>, vector<1x32xf32>
    %cst_29 = arith.constant dense<0.000000e+00> : vector<8x32xf32>
    %41 = tpu.matmul %38, %39, %cst_29 {dimension_numbers = #tpu.dot_dimension_numbers<[1], [0], [0], [1], [0, 0, 1, 1], [], []>, precision = #tpu.contract_precision<fp32>} : vector<8x32xf32>, vector<32x32xf32>, vector<8x32xf32> -> vector<8x32xf32>
    %42 = vector.broadcast %40 : vector<1x32xf32> to vector<8x32xf32>
    %43 = arith.addf %41, %42 : vector<8x32xf32>
    %c0_30 = arith.constant 0 : index
    %c0_31 = arith.constant 0 : index
    %44 = vector.load %arg4[%c0_30, %c0_31] : memref<8x32xf32, #tpu.memory_space<vmem>>, vector<8x32xf32>
    tpu.vector_store %arg4[%c0_30, %c0_31], %43 {strides = array<i32>} : memref<8x32xf32, #tpu.memory_space<vmem>>, vector<8x32xf32>,
    return
  }
  func.func @transform_0(%arg0: i32, %arg1: memref<8xi32, #tpu.memory_space<smem>>) -> (i32, i32) {
    %c0_i32 = arith.constant 0 : i32
    %c0_i32_0 = arith.constant 0 : i32
    %c0_i32_1 = arith.constant 0 : i32
    return %c0_i32, %c0_i32_0 : i32, i32
  }
  func.func @transform_1(%arg0: i32, %arg1: memref<8xi32, #tpu.memory_space<smem>>) -> (i32, i32) {
    %c0_i32 = arith.constant 0 : i32
    %c0_i32_0 = arith.constant 0 : i32
    %c0_i32_1 = arith.constant 0 : i32
    return %c0_i32, %c0_i32_0 : i32, i32
  }
  func.func @transform_2(%arg0: i32, %arg1: memref<8xi32, #tpu.memory_space<smem>>) -> (i32, i32) {
    %c0_i32 = arith.constant 0 : i32
    %c0_i32_0 = arith.constant 0 : i32
    %c0_i32_1 = arith.constant 0 : i32
    return %c0_i32, %c0_i32_0 : i32, i32
  }
}

</mosaic_0001>

<llo_original>
// kernel: tpu_custom_call.1
$region0: #{tpu_custom_call.1}
  #allocation0 [shape = 'u32[]', space=smem, size = 0x4, offset = 0x4, fixed_abs, tag = 'smem constant byte address 0x4 - core index']
  #allocation1 [shape = 'u32[144,128]{1,0:T(1,128)}', space=vmem, size = 0x12000, scoped, tag = 'internal scratch']
  #allocation2 [shape = 'f32[8,32]{1,0:T(8,128)}', space=vmem, size = 0x1000, scoped, tag = 'scratch operand']
  #allocation3 [shape = 's32[1]{0}', space=sflag, size = 0x4, scoped, tag = 'scoped memory for tpu_custom_call.1']
  #allocation4 [shape = 'u8[512]{0}', space=smem, size = 0x200, scoped, tag = 'prefetched SMEM operand 0']
  %s0 = inlined_call_operand.vmem [shape: s32[8], index: 0, kind: input, shape index: {}]
  %s1 = inlined_call_operand.vmem [shape: f32[16,32], index: 1, kind: input, shape index: {}]
  %s2 = inlined_call_operand.vmem [shape: f32[33,32], index: 2, kind: input, shape index: {}]
  %s3 = inlined_call_operand.hbm [shape: f32[8,32], index: 3, kind: output, shape index: {}]
  %s4 = sld [smem:[#allocation0]]
  $region18: #{tpu_custom_call.1} parent=0
    _
  %s6 = ssub.s32 1, %s4
  %s7 = scalar_select 0, %s6, %s4
  %s8 = sshll.u32 %s0, 4
  %s9 = int_to_ptr.vmem [resolvable:$true] %s8
  %11 = dma.vmem_to_smem %s9, 16, [#allocation4], [#allocation3]
  %12 = dma.done [#allocation3], 16
  %13 = sfence
  $region1: #{tpu_custom_call.1} parent=0
    #allocation5 [shape = 'u8[4096]{0}', space=vmem, size = 0x1000, scoped, tag = 'output window, operand 0, single buffered']
    #allocation6 [shape = 's32[1]{0}', space=sflag, size = 0x4, scoped, tag = 'scoped memory for tpu_custom_call.1']
    %14 = vsyncpa [#allocation6], 0
    // Predicated region
    $region2: #{tpu_custom_call.1} parent=1 // pred_check
      _
    $region3: #{tpu_custom_call.1} parent=1 // pred_check_branch
      %16 = sbr.rel (0) target = $region5
    $region4: #{tpu_custom_call.1} parent=1 // pred_region
      _
    $region5: #{tpu_custom_call.1} parent=1 // pred_fallthru
      _
    // Predicated region
    $region6: #{tpu_custom_call.1} parent=1 // pred_check
      _
    $region7: #{tpu_custom_call.1} parent=1 // pred_check_branch
      %18 = sbr.rel (0) target = $region9
    $region8: #{tpu_custom_call.1} parent=1 // pred_region
      _
    $region9: #{tpu_custom_call.1} parent=1 // pred_fallthru
      _
    %s19 = sld [smem:[#allocation4]]
    %s20 = scalar_lea.vmem %s1, %s19
    %v21 = vld [vmem:[%s20] sm:$0x1]
    %vm22 = vcmask 253952
    %23 = vst.msk [vmem:[#allocation2] sm:$0x1] %vm22, %v21
    %s24 = sld [smem:[#allocation4 + $0x1]]
    %s25 = scalar_lea.vmem %s1, %s24
    %v26 = vld [vmem:[%s25] sm:$0x1]
    %27 = vst.msk [vmem:[#allocation2 + $0x1] sm:$0x1] %vm22, %v26
    %s28 = sld [smem:[#allocation4 + $0x2]]
    %s29 = scalar_lea.vmem %s1, %s28
    %v30 = vld [vmem:[%s29] sm:$0x1]
    %31 = vst.msk [vmem:[#allocation2 + $0x2] sm:$0x1] %vm22, %v30
    %s32 = sld [smem:[#allocation4 + $0x3]]
    %s33 = scalar_lea.vmem %s1, %s32
    %v34 = vld [vmem:[%s33] sm:$0x1]
    %35 = vst.msk [vmem:[#allocation2 + $0x3] sm:$0x1] %vm22, %v34
    %s36 = sld [smem:[#allocation4 + $0x4]]
    %s37 = scalar_lea.vmem %s1, %s36
    %v38 = vld [vmem:[%s37] sm:$0x1]
    %39 = vst.msk [vmem:[#allocation2 + $0x4] sm:$0x1] %vm22, %v38
    %s40 = sld [smem:[#allocation4 + $0x5]]
    %s41 = scalar_lea.vmem %s1, %s40
    %v42 = vld [vmem:[%s41] sm:$0x1]
    %43 = vst.msk [vmem:[#allocation2 + $0x5] sm:$0x1] %vm22, %v42
    %s44 = sld [smem:[#allocation4 + $0x6]]
    %s45 = scalar_lea.vmem %s1, %s44
    %v46 = vld [vmem:[%s45] sm:$0x1]
    %47 = vst.msk [vmem:[#allocation2 + $0x6] sm:$0x1] %vm22, %v46
    %s48 = sld [smem:[#allocation4 + $0x7]]
    %s49 = scalar_lea.vmem %s1, %s48
    %v50 = vld [vmem:[%s49] sm:$0x1]
    %51 = vst.msk [vmem:[#allocation2 + $0x7] sm:$0x1] %vm22, %v50
    %v52 = vld [vmem:[#allocation2] sm:$0xff]
    %v53 = vxor.u32 %v52, 2147483648
    %v54 = vmul.f32 %v53, 1.442695
    %v55 = vpow.pop %v54
    %v56 = vadd.f32 %v55, 1.0
    %v57 = vrcp.pop %v56
    %v58 = vmul.f32 1.0, %v57
    %v59 = vmul.f32 %v52, %v58
    %v60 = vld [vmem:[%s2] sm:$0xff]
    %v61 = vld [vmem:[%s2 + $0x8] sm:$0xff]
    %v62 = vld [vmem:[%s2 + $0x10] sm:$0xff]
    %v63 = vld [vmem:[%s2 + $0x18] sm:$0xff]
    %v64 = vld [vmem:[%s2 + $0x20] sm:$0x1]
    %v65 = vlaneseq
    %v66 = vshrl.u32 %v65, 7
    %v67 = vsub.s32 0, %v66
    %v68 = vrot.slane %v64, %v67
    %vm69 = vcmask 261120
    %v71 = vsel %vm69, %v59, 0
    %73 = vmatprep.subr.mxu0 0.0
    %v74 = vand.u32 %v60, 4294901760
    %75 = vmatpush1.msra.mxu0 %v74
    %76 = vmatprep.subr.mxu0 0.0
    %v77 = vand.u32 %v61, 4294901760
    %78 = vmatpush1.msra.mxu0 %v77
    %79 = vmatprep.subr.mxu0 0.0
    %v80 = vand.u32 %v62, 4294901760
    %81 = vmatpush1.msra.mxu0 %v80
    %82 = vmatprep.subr.mxu0 0.0
    %v83 = vand.u32 %v63, 4294901760
    %84 = vmatpush1.msra.mxu0 %v83
    %85 = vmatprep.subr.mxu0 0.0
    %86 = vmatpush1.msra.mxu0 0.0
    %87 = vmatprep.subr.mxu0 0.0
    %88 = vmatpush1.msra.mxu0 0.0
    %89 = vmatprep.subr.mxu0 0.0
    %90 = vmatpush1.msra.mxu0 0.0
    %91 = vmatprep.subr.mxu0 0.0
    %92 = vmatpush1.msra.mxu0 0.0
    %93 = vmatprep.subr.mxu0 0.0
    %94 = vmatpush1.msra.mxu0 0.0
    %95 = vmatprep.subr.mxu0 0.0
    %96 = vmatpush1.msra.mxu0 0.0
    %97 = vmatprep.subr.mxu0 0.0
    %98 = vmatpush1.msra.mxu0 0.0
    %99 = vmatprep.subr.mxu0 0.0
    %100 = vmatpush1.msra.mxu0 0.0
    %101 = vmatprep.subr.mxu0 0.0
    %102 = vmatpush1.msra.mxu0 0.0
    %103 = vmatprep.subr.mxu0 0.0
    %104 = vmatpush1.msra.mxu0 0.0
    %105 = vmatprep.subr.mxu0 0.0
    %106 = vmatpush1.msra.mxu0 0.0
    %107 = vmatprep.subr.mxu0 0.0
    %108 = vmatpush1.msra.mxu0 0.0
    %109 = vmatprep.subr.mxu0 0.0
    %110 = vmatpush1.msra.mxu0 0.0
    %111 = vmatprep.subr.mxu0 0.0
    %112 = vmatpush1.msra.mxu0 0.0
    %113 = vmatprep.subr.mxu0 0.0
    %114 = vmatpush1.msra.mxu0 0.0
    %115 = vmatprep.subr.mxu0 0.0
    %116 = vmatpush1.msra.mxu0 0.0
    %117 = vmatprep.subr.mxu0 0.0
    %118 = vmatpush1.msra.mxu0 0.0
    %119 = vmatprep.subr.mxu0 0.0
    %120 = vmatpush1.msra.mxu0 0.0
    %121 = vmatprep.subr.mxu0 0.0
    %122 = vmatpush1.msra.mxu0 0.0
    %123 = vmatprep.subr.mxu0 0.0
    %124 = vmatpush1.msra.mxu0 0.0
    %125 = vmatprep.subr.mxu0 0.0
    %126 = vmatpush1.msra.mxu0 0.0
    %127 = vmatprep.subr.mxu0 0.0
    %128 = vmatpush1.msra.mxu0 0.0
    %129 = vmatprep.subr.mxu0 0.0
    %130 = vmatpush1.msra.mxu0 0.0
    %131 = vmatprep.subr.mxu0 0.0
    %132 = vmatpush1.msra.mxu0 0.0
    %133 = vmatprep.subr.mxu0 0.0
    %134 = vmatpush1.msra.mxu0 0.0
    %135 = vmatprep.subr.mxu0 0.0
    %136 = vmatpush1.msra.mxu0 0.0
    %137 = vmatprep.subr.mxu0 0.0
    %138 = vmatpush1.msra.mxu0 0.0
    %139 = vmatprep.subr.mxu0 0.0
    %140 = vmatpush1.msra.mxu0 0.0
    %141 = vmatprep.mubr.f32.mxu0 0.0
    %v142 = vand.u32 %v71, 4294901760
    %v143 = vsub.f32 %v71, %v142
    %v144 = vand.u32 %v143, 4294901760
    %v145 = vsub.f32 %v143, %v144
    %v146 = vand.u32 %v145, 4294901760
    %147 = vmatmul.mubr.f32.gmra.mrb[0].mxu0 %v146
    %v148 = vpop.f32.mrb[0].mxu0
    %v149 = vadd.f32 %v68, %v148
    %v150 = vpop.f32.mrb[0].mxu0
    %151 = vdwg.mxu0
    %152 = vmatprep.subr.mxu0 0.0
    %v153 = vand.u32 %v60, 4294901760
    %v154 = vsub.f32 %v60, %v153
    %v155 = vand.u32 %v154, 4294901760
    %v156 = vsub.f32 %v154, %v155
    %v157 = vand.u32 %v156, 4294901760
    %158 = vmatpush1.msra.mxu0 %v157
    %159 = vmatprep.subr.mxu0 0.0
    %v160 = vand.u32 %v61, 4294901760
    %v161 = vsub.f32 %v61, %v160
    %v162 = vand.u32 %v161, 4294901760
    %v163 = vsub.f32 %v161, %v162
    %v164 = vand.u32 %v163, 4294901760
    %165 = vmatpush1.msra.mxu0 %v164
    %166 = vmatprep.subr.mxu0 0.0
    %v167 = vand.u32 %v62, 4294901760
    %v168 = vsub.f32 %v62, %v167
    %v169 = vand.u32 %v168, 4294901760
    %v170 = vsub.f32 %v168, %v169
    %v171 = vand.u32 %v170, 4294901760
    %172 = vmatpush1.msra.mxu0 %v171
    %173 = vmatprep.subr.mxu0 0.0
    %v174 = vand.u32 %v63, 4294901760
    %v175 = vsub.f32 %v63, %v174
    %v176 = vand.u32 %v175, 4294901760
    %v177 = vsub.f32 %v175, %v176
    %v178 = vand.u32 %v177, 4294901760
    %179 = vmatpush1.msra.mxu0 %v178
    %180 = vmatprep.subr.mxu0 0.0
    %181 = vmatpush1.msra.mxu0 0.0
    %182 = vmatprep.subr.mxu0 0.0
    %183 = vmatpush1.msra.mxu0 0.0
    %184 = vmatprep.subr.mxu0 0.0
    %185 = vmatpush1.msra.mxu0 0.0
    %186 = vmatprep.subr.mxu0 0.0
    %187 = vmatpush1.msra.mxu0 0.0
    %188 = vmatprep.subr.mxu0 0.0
    %189 = vmatpush1.msra.mxu0 0.0
    %190 = vmatprep.subr.mxu0 0.0
    %191 = vmatpush1.msra.mxu0 0.0
    %192 = vmatprep.subr.mxu0 0.0
    %193 = vmatpush1.msra.mxu0 0.0
    %194 = vmatprep.subr.mxu0 0.0
    %195 = vmatpush1.msra.mxu0 0.0
    %196 = vmatprep.subr.mxu0 0.0
    %197 = vmatpush1.msra.mxu0 0.0
    %198 = vmatprep.subr.mxu0 0.0
    %199 = vmatpush1.msra.mxu0 0.0
    %200 = vmatprep.subr.mxu0 0.0
    %201 = vmatpush1.msra.mxu0 0.0
    %202 = vmatprep.subr.mxu0 0.0
    %203 = vmatpush1.msra.mxu0 0.0
    %204 = vmatprep.subr.mxu0 0.0
    %205 = vmatpush1.msra.mxu0 0.0
    %206 = vmatprep.subr.mxu0 0.0
    %207 = vmatpush1.msra.mxu0 0.0
    %208 = vmatprep.subr.mxu0 0.0
    %209 = vmatpush1.msra.mxu0 0.0
    %210 = vmatprep.subr.mxu0 0.0
    %211 = vmatpush1.msra.mxu0 0.0
    %212 = vmatprep.subr.mxu0 0.0
    %213 = vmatpush1.msra.mxu0 0.0
    %214 = vmatprep.subr.mxu0 0.0
    %215 = vmatpush1.msra.mxu0 0.0
    %216 = vmatprep.subr.mxu0 0.0
    %217 = vmatpush1.msra.mxu0 0.0
    %218 = vmatprep.subr.mxu0 0.0
    %219 = vmatpush1.msra.mxu0 0.0
    %220 = vmatprep.subr.mxu0 0.0
    %221 = vmatpush1.msra.mxu0 0.0
    %222 = vmatprep.subr.mxu0 0.0
    %223 = vmatpush1.msra.mxu0 0.0
    %224 = vmatprep.subr.mxu0 0.0
    %225 = vmatpush1.msra.mxu0 0.0
    %226 = vmatprep.subr.mxu0 0.0
    %227 = vmatpush1.msra.mxu0 0.0
    %228 = vmatprep.subr.mxu0 0.0
    %229 = vmatpush1.msra.mxu0 0.0
    %230 = vmatprep.subr.mxu0 0.0
    %231 = vmatpush1.msra.mxu0 0.0
    %232 = vmatprep.subr.mxu0 0.0
    %233 = vmatpush1.msra.mxu0 0.0
    %234 = vmatprep.subr.mxu0 0.0
    %235 = vmatpush1.msra.mxu0 0.0
    %236 = vmatprep.mubr.f32.mxu0 0.0
    %v237 = vand.u32 %v71, 4294901760
    %238 = vmatmul.mubr.f32.gmra.mrb[0].mxu0 %v237
    %v239 = vpop.f32.mrb[0].mxu0
    %v240 = vadd.f32 %v149, %v239
    %v241 = vpop.f32.mrb[0].mxu0
    %242 = vdwg.mxu0
    %243 = vmatprep.subr.mxu0 0.0
    %v244 = vand.u32 %v60, 4294901760
    %v245 = vsub.f32 %v60, %v244
    %246 = vmatpush1.msra.mxu0 %v245
    %247 = vmatprep.subr.mxu0 0.0
    %v248 = vand.u32 %v61, 4294901760
    %v249 = vsub.f32 %v61, %v248
    %250 = vmatpush1.msra.mxu0 %v249
    %251 = vmatprep.subr.mxu0 0.0
    %v252 = vand.u32 %v62, 4294901760
    %v253 = vsub.f32 %v62, %v252
    %254 = vmatpush1.msra.mxu0 %v253
    %255 = vmatprep.subr.mxu0 0.0
    %v256 = vand.u32 %v63, 4294901760
    %v257 = vsub.f32 %v63, %v256
    %258 = vmatpush1.msra.mxu0 %v257
    %259 = vmatprep.subr.mxu0 0.0
    %260 = vmatpush1.msra.mxu0 0.0
    %261 = vmatprep.subr.mxu0 0.0
    %262 = vmatpush1.msra.mxu0 0.0
    %263 = vmatprep.subr.mxu0 0.0
    %264 = vmatpush1.msra.mxu0 0.0
    %265 = vmatprep.subr.mxu0 0.0
    %266 = vmatpush1.msra.mxu0 0.0
    %267 = vmatprep.subr.mxu0 0.0
    %268 = vmatpush1.msra.mxu0 0.0
    %269 = vmatprep.subr.mxu0 0.0
    %270 = vmatpush1.msra.mxu0 0.0
    %271 = vmatprep.subr.mxu0 0.0
    %272 = vmatpush1.msra.mxu0 0.0
    %273 = vmatprep.subr.mxu0 0.0
    %274 = vmatpush1.msra.mxu0 0.0
    %275 = vmatprep.subr.mxu0 0.0
    %276 = vmatpush1.msra.mxu0 0.0
    %277 = vmatprep.subr.mxu0 0.0
    %278 = vmatpush1.msra.mxu0 0.0
    %279 = vmatprep.subr.mxu0 0.0
    %280 = vmatpush1.msra.mxu0 0.0
    %281 = vmatprep.subr.mxu0 0.0
    %282 = vmatpush1.msra.mxu0 0.0
    %283 = vmatprep.subr.mxu0 0.0
    %284 = vmatpush1.msra.mxu0 0.0
    %285 = vmatprep.subr.mxu0 0.0
    %286 = vmatpush1.msra.mxu0 0.0
    %287 = vmatprep.subr.mxu0 0.0
    %288 = vmatpush1.msra.mxu0 0.0
    %289 = vmatprep.subr.mxu0 0.0
    %290 = vmatpush1.msra.mxu0 0.0
    %291 = vmatprep.subr.mxu0 0.0
    %292 = vmatpush1.msra.mxu0 0.0
    %293 = vmatprep.subr.mxu0 0.0
    %294 = vmatpush1.msra.mxu0 0.0
    %295 = vmatprep.subr.mxu0 0.0
    %296 = vmatpush1.msra.mxu0 0.0
    %297 = vmatprep.subr.mxu0 0.0
    %298 = vmatpush1.msra.mxu0 0.0
    %299 = vmatprep.subr.mxu0 0.0
    %300 = vmatpush1.msra.mxu0 0.0
    %301 = vmatprep.subr.mxu0 0.0
    %302 = vmatpush1.msra.mxu0 0.0
    %303 = vmatprep.subr.mxu0 0.0
    %304 = vmatpush1.msra.mxu0 0.0
    %305 = vmatprep.subr.mxu0 0.0
    %306 = vmatpush1.msra.mxu0 0.0
    %307 = vmatprep.subr.mxu0 0.0
    %308 = vmatpush1.msra.mxu0 0.0
    %309 = vmatprep.subr.mxu0 0.0
    %310 = vmatpush1.msra.mxu0 0.0
    %311 = vmatprep.subr.mxu0 0.0
    %312 = vmatpush1.msra.mxu0 0.0
    %313 = vmatprep.subr.mxu0 0.0
    %314 = vmatpush1.msra.mxu0 0.0
    %315 = vmatprep.mubr.f32.mxu0 0.0
    %v316 = vand.u32 %v71, 4294901760
    %v317 = vsub.f32 %v71, %v316
    %318 = vmatmul.mubr.f32.gmra.mrb[0].mxu0 %v317
    %v319 = vpop.f32.mrb[0].mxu0
    %v320 = vadd.f32 %v240, %v319
    %v321 = vpop.f32.mrb[0].mxu0
    %322 = vdwg.mxu0
    %323 = vmatprep.subr.mxu0 0.0
    %v324 = vand.u32 %v60, 4294901760
    %325 = vmatpush1.msra.mxu0 %v324
    %326 = vmatprep.subr.mxu0 0.0
    %v327 = vand.u32 %v61, 4294901760
    %328 = vmatpush1.msra.mxu0 %v327
    %329 = vmatprep.subr.mxu0 0.0
    %v330 = vand.u32 %v62, 4294901760
    %331 = vmatpush1.msra.mxu0 %v330
    %332 = vmatprep.subr.mxu0 0.0
    %v333 = vand.u32 %v63, 4294901760
    %334 = vmatpush1.msra.mxu0 %v333
    %335 = vmatprep.subr.mxu0 0.0
    %336 = vmatpush1.msra.mxu0 0.0
    %337 = vmatprep.subr.mxu0 0.0
    %338 = vmatpush1.msra.mxu0 0.0
    %339 = vmatprep.subr.mxu0 0.0
    %340 = vmatpush1.msra.mxu0 0.0
    %341 = vmatprep.subr.mxu0 0.0
    %342 = vmatpush1.msra.mxu0 0.0
    %343 = vmatprep.subr.mxu0 0.0
    %344 = vmatpush1.msra.mxu0 0.0
    %345 = vmatprep.subr.mxu0 0.0
    %346 = vmatpush1.msra.mxu0 0.0
    %347 = vmatprep.subr.mxu0 0.0
    %348 = vmatpush1.msra.mxu0 0.0
    %349 = vmatprep.subr.mxu0 0.0
    %350 = vmatpush1.msra.mxu0 0.0
    %351 = vmatprep.subr.mxu0 0.0
    %352 = vmatpush1.msra.mxu0 0.0
    %353 = vmatprep.subr.mxu0 0.0
    %354 = vmatpush1.msra.mxu0 0.0
    %355 = vmatprep.subr.mxu0 0.0
    %356 = vmatpush1.msra.mxu0 0.0
    %357 = vmatprep.subr.mxu0 0.0
    %358 = vmatpush1.msra.mxu0 0.0
    %359 = vmatprep.subr.mxu0 0.0
    %360 = vmatpush1.msra.mxu0 0.0
    %361 = vmatprep.subr.mxu0 0.0
    %362 = vmatpush1.msra.mxu0 0.0
    %363 = vmatprep.subr.mxu0 0.0
    %364 = vmatpush1.msra.mxu0 0.0
    %365 = vmatprep.subr.mxu0 0.0
    %366 = vmatpush1.msra.mxu0 0.0
    %367 = vmatprep.subr.mxu0 0.0
    %368 = vmatpush1.msra.mxu0 0.0
    %369 = vmatprep.subr.mxu0 0.0
    %370 = vmatpush1.msra.mxu0 0.0
    %371 = vmatprep.subr.mxu0 0.0
    %372 = vmatpush1.msra.mxu0 0.0
    %373 = vmatprep.subr.mxu0 0.0
    %374 = vmatpush1.msra.mxu0 0.0
    %375 = vmatprep.subr.mxu0 0.0
    %376 = vmatpush1.msra.mxu0 0.0
    %377 = vmatprep.subr.mxu0 0.0
    %378 = vmatpush1.msra.mxu0 0.0
    %379 = vmatprep.subr.mxu0 0.0
    %380 = vmatpush1.msra.mxu0 0.0
    %381 = vmatprep.subr.mxu0 0.0
    %382 = vmatpush1.msra.mxu0 0.0
    %383 = vmatprep.subr.mxu0 0.0
    %384 = vmatpush1.msra.mxu0 0.0
    %385 = vmatprep.subr.mxu0 0.0
    %386 = vmatpush1.msra.mxu0 0.0
    %387 = vmatprep.subr.mxu0 0.0
    %388 = vmatpush1.msra.mxu0 0.0
    %389 = vmatprep.subr.mxu0 0.0
    %390 = vmatpush1.msra.mxu0 0.0
    %391 = vmatprep.mubr.f32.mxu0 0.0
    %v392 = vand.u32 %v71, 4294901760
    %v393 = vsub.f32 %v71, %v392
    %v394 = vand.u32 %v393, 4294901760
    %395 = vmatmul.mubr.f32.gmra.mrb[0].mxu0 %v394
    %v396 = vpop.f32.mrb[0].mxu0
    %v397 = vadd.f32 %v320, %v396
    %v398 = vpop.f32.mrb[0].mxu0
    %399 = vdwg.mxu0
    %400 = vmatprep.subr.mxu0 0.0
    %v401 = vand.u32 %v60, 4294901760
    %v402 = vsub.f32 %v60, %v401
    %v403 = vand.u32 %v402, 4294901760
    %404 = vmatpush1.msra.mxu0 %v403
    %405 = vmatprep.subr.mxu0 0.0
    %v406 = vand.u32 %v61, 4294901760
    %v407 = vsub.f32 %v61, %v406
    %v408 = vand.u32 %v407, 4294901760
    %409 = vmatpush1.msra.mxu0 %v408
    %410 = vmatprep.subr.mxu0 0.0
    %v411 = vand.u32 %v62, 4294901760
    %v412 = vsub.f32 %v62, %v411
    %v413 = vand.u32 %v412, 4294901760
    %414 = vmatpush1.msra.mxu0 %v413
    %415 = vmatprep.subr.mxu0 0.0
    %v416 = vand.u32 %v63, 4294901760
    %v417 = vsub.f32 %v63, %v416
    %v418 = vand.u32 %v417, 4294901760
    %419 = vmatpush1.msra.mxu0 %v418
    %420 = vmatprep.subr.mxu0 0.0
    %421 = vmatpush1.msra.mxu0 0.0
    %422 = vmatprep.subr.mxu0 0.0
    %423 = vmatpush1.msra.mxu0 0.0
    %424 = vmatprep.subr.mxu0 0.0
    %425 = vmatpush1.msra.mxu0 0.0
    %426 = vmatprep.subr.mxu0 0.0
    %427 = vmatpush1.msra.mxu0 0.0
    %428 = vmatprep.subr.mxu0 0.0
    %429 = vmatpush1.msra.mxu0 0.0
    %430 = vmatprep.subr.mxu0 0.0
    %431 = vmatpush1.msra.mxu0 0.0
    %432 = vmatprep.subr.mxu0 0.0
    %433 = vmatpush1.msra.mxu0 0.0
    %434 = vmatprep.subr.mxu0 0.0
    %435 = vmatpush1.msra.mxu0 0.0
    %436 = vmatprep.subr.mxu0 0.0
    %437 = vmatpush1.msra.mxu0 0.0
    %438 = vmatprep.subr.mxu0 0.0
    %439 = vmatpush1.msra.mxu0 0.0
    %440 = vmatprep.subr.mxu0 0.0
    %441 = vmatpush1.msra.mxu0 0.0
    %442 = vmatprep.subr.mxu0 0.0
    %443 = vmatpush1.msra.mxu0 0.0
    %444 = vmatprep.subr.mxu0 0.0
    %445 = vmatpush1.msra.mxu0 0.0
    %446 = vmatprep.subr.mxu0 0.0
    %447 = vmatpush1.msra.mxu0 0.0
    %448 = vmatprep.subr.mxu0 0.0
    %449 = vmatpush1.msra.mxu0 0.0
    %450 = vmatprep.subr.mxu0 0.0
    %451 = vmatpush1.msra.mxu0 0.0
    %452 = vmatprep.subr.mxu0 0.0
    %453 = vmatpush1.msra.mxu0 0.0
    %454 = vmatprep.subr.mxu0 0.0
    %455 = vmatpush1.msra.mxu0 0.0
    %456 = vmatprep.subr.mxu0 0.0
    %457 = vmatpush1.msra.mxu0 0.0
    %458 = vmatprep.subr.mxu0 0.0
    %459 = vmatpush1.msra.mxu0 0.0
    %460 = vmatprep.subr.mxu0 0.0
    %461 = vmatpush1.msra.mxu0 0.0
    %462 = vmatprep.subr.mxu0 0.0
    %463 = vmatpush1.msra.mxu0 0.0
    %464 = vmatprep.subr.mxu0 0.0
    %465 = vmatpush1.msra.mxu0 0.0
    %466 = vmatprep.subr.mxu0 0.0
    %467 = vmatpush1.msra.mxu0 0.0
    %468 = vmatprep.subr.mxu0 0.0
    %469 = vmatpush1.msra.mxu0 0.0
    %470 = vmatprep.subr.mxu0 0.0
    %471 = vmatpush1.msra.mxu0 0.0
    %472 = vmatprep.subr.mxu0 0.0
    %473 = vmatpush1.msra.mxu0 0.0
    %474 = vmatprep.subr.mxu0 0.0
    %475 = vmatpush1.msra.mxu0 0.0
    %476 = vmatprep.mubr.f32.mxu0 0.0
    %v477 = vand.u32 %v71, 4294901760
    %478 = vmatmul.mubr.f32.gmra.mrb[0].mxu0 %v477
    %v479 = vpop.f32.mrb[0].mxu0
    %v480 = vadd.f32 %v397, %v479
    %v481 = vpop.f32.mrb[0].mxu0
    %482 = vdwg.mxu0
    %483 = vmatprep.subr.mxu0 0.0
    %v484 = vand.u32 %v60, 4294901760
    %485 = vmatpush1.msra.mxu0 %v484
    %486 = vmatprep.subr.mxu0 0.0
    %v487 = vand.u32 %v61, 4294901760
    %488 = vmatpush1.msra.mxu0 %v487
    %489 = vmatprep.subr.mxu0 0.0
    %v490 = vand.u32 %v62, 4294901760
    %491 = vmatpush1.msra.mxu0 %v490
    %492 = vmatprep.subr.mxu0 0.0
    %v493 = vand.u32 %v63, 4294901760
    %494 = vmatpush1.msra.mxu0 %v493
    %495 = vmatprep.subr.mxu0 0.0
    %496 = vmatpush1.msra.mxu0 0.0
    %497 = vmatprep.subr.mxu0 0.0
    %498 = vmatpush1.msra.mxu0 0.0
    %499 = vmatprep.subr.mxu0 0.0
    %500 = vmatpush1.msra.mxu0 0.0
    %501 = vmatprep.subr.mxu0 0.0
    %502 = vmatpush1.msra.mxu0 0.0
    %503 = vmatprep.subr.mxu0 0.0
    %504 = vmatpush1.msra.mxu0 0.0
    %505 = vmatprep.subr.mxu0 0.0
    %506 = vmatpush1.msra.mxu0 0.0
    %507 = vmatprep.subr.mxu0 0.0
    %508 = vmatpush1.msra.mxu0 0.0
    %509 = vmatprep.subr.mxu0 0.0
    %510 = vmatpush1.msra.mxu0 0.0
    %511 = vmatprep.subr.mxu0 0.0
    %512 = vmatpush1.msra.mxu0 0.0
    %513 = vmatprep.subr.mxu0 0.0
    %514 = vmatpush1.msra.mxu0 0.0
    %515 = vmatprep.subr.mxu0 0.0
    %516 = vmatpush1.msra.mxu0 0.0
    %517 = vmatprep.subr.mxu0 0.0
    %518 = vmatpush1.msra.mxu0 0.0
    %519 = vmatprep.subr.mxu0 0.0
    %520 = vmatpush1.msra.mxu0 0.0
    %521 = vmatprep.subr.mxu0 0.0
    %522 = vmatpush1.msra.mxu0 0.0
    %523 = vmatprep.subr.mxu0 0.0
    %524 = vmatpush1.msra.mxu0 0.0
    %525 = vmatprep.subr.mxu0 0.0
    %526 = vmatpush1.msra.mxu0 0.0
    %527 = vmatprep.subr.mxu0 0.0
    %528 = vmatpush1.msra.mxu0 0.0
    %529 = vmatprep.subr.mxu0 0.0
    %530 = vmatpush1.msra.mxu0 0.0
    %531 = vmatprep.subr.mxu0 0.0
    %532 = vmatpush1.msra.mxu0 0.0
    %533 = vmatprep.subr.mxu0 0.0
    %534 = vmatpush1.msra.mxu0 0.0
    %535 = vmatprep.subr.mxu0 0.0
    %536 = vmatpush1.msra.mxu0 0.0
    %537 = vmatprep.subr.mxu0 0.0
    %538 = vmatpush1.msra.mxu0 0.0
    %539 = vmatprep.subr.mxu0 0.0
    %540 = vmatpush1.msra.mxu0 0.0
    %541 = vmatprep.subr.mxu0 0.0
    %542 = vmatpush1.msra.mxu0 0.0
    %543 = vmatprep.subr.mxu0 0.0
    %544 = vmatpush1.msra.mxu0 0.0
    %545 = vmatprep.subr.mxu0 0.0
    %546 = vmatpush1.msra.mxu0 0.0
    %547 = vmatprep.subr.mxu0 0.0
    %548 = vmatpush1.msra.mxu0 0.0
    %549 = vmatprep.subr.mxu0 0.0
    %550 = vmatpush1.msra.mxu0 0.0
    %551 = vmatprep.mubr.f32.mxu0 0.0
    %v552 = vand.u32 %v71, 4294901760
    %553 = vmatmul.mubr.f32.gmra.mrb[0].mxu0 %v552
    %v554 = vpop.f32.mrb[0].mxu0
    %v555 = vadd.f32 %v480, %v554
    %v556 = vpop.f32.mrb[0].mxu0
    %557 = vdwg.mxu0
    %558 = vst.msk [vmem:[#allocation5] sm:$0xff] %vm69, %v555
    // Predicated region
    $region10: #{tpu_custom_call.1} parent=1 // pred_check
      _
    $region11: #{tpu_custom_call.1} parent=1 // pred_check_branch
      %560 = sbr.rel (0) target = $region13
    $region12: #{tpu_custom_call.1} parent=1 // pred_region
      %s562 = ssub.s32 128, 128
      %563 = vsyncadd [#allocation6], %s562
      %s565 = sshll.u32 [#allocation5], 4
      %s566 = int_to_ptr.vmem [resolvable:$true] %s565
      %568 = dma.vmem_to_hbm [thread:$0]  %s566, 128, %s3, [#allocation6]
    $region13: #{tpu_custom_call.1} parent=1 // pred_fallthru
      _
    // Predicated region
    $region14: #{tpu_custom_call.1} parent=1 // pred_check
      _
    $region15: #{tpu_custom_call.1} parent=1 // pred_check_branch
      %570 = sbr.rel (0) target = $region17
    $region16: #{tpu_custom_call.1} parent=1 // pred_region
      %571 = dma.done [#allocation6], 128
    $region17: #{tpu_custom_call.1} parent=1 // pred_fallthru
      _
    %572 = vsyncpa [#allocation6], 1

</llo_original>
